<compile_context>
chip_gen: v7x
topology: tpu7x:2x2x1
jax: 0.10.0
libtpu: 0.0.40
codegen_flags: <defaults>
</compile_context>

<pallas_src>
import numpy as np
import jax
import jax.numpy as jnp
from jax.experimental import pallas as pl
from jax.experimental.pallas import tpu as pltpu


# ----------------------------------------------------------------------------
# BN folding (eval mode): BN(x @ w + b) == x @ (w*scale) + (b*scale + shift_bn)
# ----------------------------------------------------------------------------
def _fold_linear_bn(w, b, gamma, beta, mean, var, eps=1e-5):
    scale = gamma / jnp.sqrt(var + eps)          # (H,)
    w_f = w * scale[None, :]                     # (in, H)
    shift = b * scale + (beta - mean * scale)    # (H,)
    return w_f, shift.reshape(1, -1)


# ----------------------------------------------------------------------------
# Pallas kernel
# ----------------------------------------------------------------------------
def build_kernel(n_branches: int, h0: int, n_hidden: int):
    inv_nb = 1.0 / float(n_branches)

    def kernel(*refs):
        xcat_ref, wbd_ref, sh_br_ref = refs[0], refs[1], refs[2]

        # --- all branch Linears as one block-diagonal matmul (bf16 -> f32 acc) ---
        h_all = jnp.dot(xcat_ref[...], wbd_ref[...],
                        preferred_element_type=jnp.float32)
        h_all = jnp.maximum(h_all + sh_br_ref[...], 0.0)      # folded bias+BN, ReLU

        # torch.stack(..., -1).mean(-1)  ==  sum over branch slices / n_branches
        h = h_all[:, 0:h0]
        for bi in range(1, n_branches):
            h = h + h_all[:, bi * h0:(bi + 1) * h0]
        h = h * inv_nb

        # --- trunk MLP hidden layers: Linear(+folded BN) + ReLU ---
        idx = 3
        for _ in range(n_hidden):
            w_ref, sh_ref = refs[idx], refs[idx + 1]
            idx += 2
            h = jnp.dot(h.astype(w_ref.dtype), w_ref[...],
                        preferred_element_type=jnp.float32)
            h = jnp.maximum(h + sh_ref[...], 0.0)

        # --- width-1 output projection off the MXU: VPU mul + lane reduce ---
        w_out_ref, b_out_ref, out_ref = refs[idx], refs[idx + 1], refs[idx + 2]
        logit = jnp.sum(h * w_out_ref[...], axis=-1, keepdims=True) + b_out_ref[0, 0]
        # exp(-x) may overflow to inf for very negative logits -> 1/(1+inf)=0,
        # which is the correct sigmoid limit (no NaN).
        out_ref[...] = 1.0 / (1.0 + jnp.exp(-logit))

    return kernel


# ----------------------------------------------------------------------------
# Wrapper-side folding / packing (shared math with the reference).
# ----------------------------------------------------------------------------
def prepare_folded(params, compute_dtype=jnp.bfloat16):
    branches = params["branches"]
    n_branches = len(branches)
    h0 = branches[0]["w"].shape[1]
    in_dims = [br["w"].shape[0] for br in branches]
    k_total = int(sum(in_dims))

    # block-diagonal branch weight (K_total, n_branches*H0), BN scale folded in
    wbd = jnp.zeros((k_total, n_branches * h0), jnp.float32)
    shifts = []
    off = 0
    for bi, br in enumerate(branches):
        w_f, sh = _fold_linear_bn(br["w"], br["b"], br["bn_gamma"], br["bn_beta"],
                                  br["bn_mean"], br["bn_var"])
        wbd = wbd.at[off:off + in_dims[bi], bi * h0:(bi + 1) * h0].set(w_f)
        shifts.append(sh)
        off += in_dims[bi]

    folded = {
        "wbd": wbd.astype(compute_dtype),
        "shift_br": jnp.concatenate(shifts, axis=1).astype(jnp.float32),
        "hidden": [],
        "w_out_row": params["w_out"].reshape(1, -1).astype(jnp.float32),
        "b_out": params["b_out"].reshape(1, 1).astype(jnp.float32),
        "n_branches": n_branches,
        "h0": h0,
        "k_total": k_total,
    }
    for hl in params["hidden"]:
        w_f, sh = _fold_linear_bn(hl["w"], hl["b"], hl["bn_gamma"], hl["bn_beta"],
                                  hl["bn_mean"], hl["bn_var"])
        folded["hidden"].append((w_f.astype(compute_dtype), sh.astype(jnp.float32)))
    return folded


def multi_dnn_forward(x_idx, params, field_dims, *, block_b=128,
                      compute_dtype=jnp.bfloat16):
    """x_idx: int32 (batch, num_fields). Returns float32 (batch,)."""
    B = x_idx.shape[0]
    offsets = jnp.asarray(
        np.concatenate([[0], np.cumsum(field_dims)[:-1]]).astype(np.int32))
    idx = x_idx + offsets[None, :]

    folded = prepare_folded(params, compute_dtype)
    nb, h0, k_total = folded["n_branches"], folded["h0"], folded["k_total"]
    n_hidden = len(folded["hidden"])

    # Embedding gather stays in JAX glue (data-dependent, realistic-vocab path).
    # TODO(synk): for tiny vocabs this could be pulled into the kernel as a
    # one-hot matmul / pl.Element row-gather to avoid the HBM round trip.
    flats = [params["branches"][bi]["table"][idx].reshape(B, -1)
             for bi in range(nb)]
    xcat = jnp.concatenate(flats, axis=1).astype(compute_dtype)   # (B, K_total)

    # batch tiling: pad B to a multiple of the tile so every block is full
    tb = int(min(block_b, max(8, -(-B // 8) * 8)))
    grid_b = -(-B // tb)
    b_pad = grid_b * tb
    if b_pad != B:
        xcat = jnp.pad(xcat, ((0, b_pad - B), (0, 0)))

    kernel_inputs = [xcat, folded["wbd"], folded["shift_br"]]
    in_specs = [
        pl.BlockSpec((tb, k_total), lambda i: (i, 0)),              # batch-tiled
        pl.BlockSpec(folded["wbd"].shape, lambda i: (0, 0)),        # VMEM-resident
        pl.BlockSpec(folded["shift_br"].shape, lambda i: (0, 0)),
    ]
    for w_f, sh in folded["hidden"]:
        kernel_inputs += [w_f, sh]
        in_specs += [pl.BlockSpec(w_f.shape, lambda i: (0, 0)),
                     pl.BlockSpec(sh.shape, lambda i: (0, 0))]
    kernel_inputs += [folded["w_out_row"], folded["b_out"]]
    in_specs += [pl.BlockSpec(folded["w_out_row"].shape, lambda i: (0, 0)),
                 pl.BlockSpec(memory_space=pltpu.MemorySpace.SMEM)]  # scalar bias

    out = pl.pallas_call(
        build_kernel(nb, h0, n_hidden),
        grid=(grid_b,),
        in_specs=in_specs,
        out_specs=pl.BlockSpec((tb, 1), lambda i: (i, 0)),
        out_shape=jax.ShapeDtypeStruct((b_pad, 1), jnp.float32),
        compiler_params=pltpu.CompilerParams(
            dimension_semantics=("parallel",),      # megacore / v7x 2-TC split
            vmem_limit_bytes=32 * 1024 * 1024,      # safe on v5e/v6e/v7x (64 MiB phys)
        ),
    )(*kernel_inputs)
    return out[:B, 0]   # torch: sigmoid(x.squeeze(1)) -> (batch,)


# ----------------------------------------------------------------------------
# Pure-JAX reference (same folded math, per-branch matmuls) for correctness.
# ----------------------------------------------------------------------------
def reference_forward(x_idx, params, field_dims, *, compute_dtype=jnp.bfloat16):
    B = x_idx.shape[0]
    offsets = jnp.asarray(
        np.concatenate([[0], np.cumsum(field_dims)[:-1]]).astype(np.int32))
    idx = x_idx + offsets[None, :]

    hs = []
    for br in params["branches"]:
        flat = br["table"][idx].reshape(B, -1).astype(compute_dtype)
        w_f, sh = _fold_linear_bn(br["w"], br["b"], br["bn_gamma"], br["bn_beta"],
                                  br["bn_mean"], br["bn_var"])
        h = jnp.dot(flat, w_f.astype(compute_dtype),
                    preferred_element_type=jnp.float32) + sh
        hs.append(jnp.maximum(h, 0.0))
    h = jnp.stack(hs, axis=-1).mean(axis=-1)

    for hl in params["hidden"]:
        w_f, sh = _fold_linear_bn(hl["w"], hl["b"], hl["bn_gamma"], hl["bn_beta"],
                                  hl["bn_mean"], hl["bn_var"])
        h = jnp.dot(h.astype(compute_dtype), w_f.astype(compute_dtype),
                    preferred_element_type=jnp.float32) + sh
        h = jnp.maximum(h, 0.0)

    logit = jnp.sum(h * params["w_out"].reshape(1, -1), axis=-1) + params["b_out"][0]
    return 1.0 / (1.0 + jnp.exp(-logit))


# ----------------------------------------------------------------------------
# Deterministic parameter construction (shapes follow the torch __init__).
# ----------------------------------------------------------------------------
def make_params(key, field_dims, embed_dims, mlp_dims):
    num_fields = len(field_dims)
    vocab = int(np.sum(field_dims))
    H0 = mlp_dims[0]
    params = {"branches": [], "hidden": []}

    def nxt():
        nonlocal key
        key, sub = jax.random.split(key)
        return sub

    for E in embed_dims:
        in_dim = E * num_fields
        params["branches"].append(dict(
            table=jax.random.normal(nxt(), (vocab, E), jnp.float32) * 0.1,
            w=jax.random.normal(nxt(), (in_dim, H0), jnp.float32) * (1.0 / np.sqrt(in_dim)),
            b=jax.random.normal(nxt(), (H0,), jnp.float32) * 0.01,
            bn_gamma=1.0 + 0.1 * jax.random.normal(nxt(), (H0,), jnp.float32),
            bn_beta=0.1 * jax.random.normal(nxt(), (H0,), jnp.float32),
            bn_mean=0.05 * jax.random.normal(nxt(), (H0,), jnp.float32),
            bn_var=jnp.abs(jax.random.normal(nxt(), (H0,), jnp.float32)) + 0.5,
        ))

    in_dim = H0
    for D in mlp_dims[1:]:
        params["hidden"].append(dict(
            w=jax.random.normal(nxt(), (in_dim, D), jnp.float32) * (1.0 / np.sqrt(in_dim)),
            b=jax.random.normal(nxt(), (D,), jnp.float32) * 0.01,
            bn_gamma=1.0 + 0.1 * jax.random.normal(nxt(), (D,), jnp.float32),
            bn_beta=0.1 * jax.random.normal(nxt(), (D,), jnp.float32),
            bn_mean=0.05 * jax.random.normal(nxt(), (D,), jnp.float32),
            bn_var=jnp.abs(jax.random.normal(nxt(), (D,), jnp.float32)) + 0.5,
        ))
        in_dim = D

    params["w_out"] = jax.random.normal(nxt(), (in_dim, 1), jnp.float32) * (1.0 / np.sqrt(in_dim))
    params["b_out"] = jax.random.normal(nxt(), (1,), jnp.float32) * 0.01
    return params


if __name__ == "__main__":
    field_dims = (10, 12, 8, 6)      # num_fields = 4
    embed_dims = (4, 8)              # two embedding towers
    mlp_dims = (32, 16, 8)           # trunk: 32 -> 16 -> 8 -> 1
    batch = 256                      # 2 grid steps of 128 rows (exercises tiling)

    key = jax.random.PRNGKey(0)
    key, kx = jax.random.split(key)
    params = make_params(key, field_dims, embed_dims, mlp_dims)

    # categorical feature indices, one column per field, each within its field dim
    cols = []
    for f, fd in enumerate(field_dims):
        kx, sub = jax.random.split(kx)
        cols.append(jax.random.randint(sub, (batch,), 0, fd, dtype=jnp.int32))
    x_idx = jnp.stack(cols, axis=1)   # (batch, num_fields) int32

    out = multi_dnn_forward(x_idx, params, field_dims)
    out = jax.block_until_ready(out)

    ref = jax.block_until_ready(reference_forward(x_idx, params, field_dims))
    assert out.shape == (batch,)
    np.testing.assert_allclose(np.asarray(out), np.asarray(ref), rtol=1e-3, atol=1e-3)

    # TODO(synk): training-mode dropout / BN batch statistics not modeled (eval mode).
    print("KERNEL_OK")
</pallas_src>

<mosaic_0001>
module attributes {stable_mosaic.version = 11 : i64} {
  func.func @kernel(%arg0: i32, %arg1: memref<128x48xbf16, #tpu.memory_space<vmem>>, %arg2: memref<48x64xbf16, #tpu.memory_space<vmem>>, %arg3: memref<1x64xf32, #tpu.memory_space<vmem>>, %arg4: memref<32x16xbf16, #tpu.memory_space<vmem>>, %arg5: memref<1x16xf32, #tpu.memory_space<vmem>>, %arg6: memref<16x8xbf16, #tpu.memory_space<vmem>>, %arg7: memref<1x8xf32, #tpu.memory_space<vmem>>, %arg8: memref<1x8xf32, #tpu.memory_space<vmem>>, %arg9: memref<1x1xf32, #tpu.memory_space<smem>>, %arg10: memref<128x1xf32, #tpu.memory_space<vmem>>) attributes {dimension_semantics = [#tpu.dimension_semantics<parallel>], iteration_bounds = array<i64: 2>, scalar_prefetch = 0 : i64, scratch_operands = 0 : i64, tpu.core_type = #tpu.core_type<tc>, window_params = [{transform_indices = @transform_0, window_bounds = array<i64: 128, 48>}, {pipeline_mode = #tpu.pipeline_mode<synchronous>, transform_indices = @transform_1, window_bounds = array<i64: 48, 64>}, {pipeline_mode = #tpu.pipeline_mode<synchronous>, transform_indices = @transform_2, window_bounds = array<i64: 1, 64>}, {pipeline_mode = #tpu.pipeline_mode<synchronous>, transform_indices = @transform_3, window_bounds = array<i64: 32, 16>}, {pipeline_mode = #tpu.pipeline_mode<synchronous>, transform_indices = @transform_4, window_bounds = array<i64: 1, 16>}, {pipeline_mode = #tpu.pipeline_mode<synchronous>, transform_indices = @transform_5, window_bounds = array<i64: 16, 8>}, {pipeline_mode = #tpu.pipeline_mode<synchronous>, transform_indices = @transform_6, window_bounds = array<i64: 1, 8>}, {pipeline_mode = #tpu.pipeline_mode<synchronous>, transform_indices = @transform_7, window_bounds = array<i64: 1, 8>}, {transform_indices = @transform_8, window_bounds = array<i64: 1, 1>}, {transform_indices = @transform_9, window_bounds = array<i64: 128, 1>}]} {
    %c0 = arith.constant 0 : index
    %c0_0 = arith.constant 0 : index
    %0 = vector.load %arg1[%c0, %c0_0] : memref<128x48xbf16, #tpu.memory_space<vmem>>, vector<128x48xbf16>
    %c0_1 = arith.constant 0 : index
    %c0_2 = arith.constant 0 : index
    %1 = vector.load %arg2[%c0_1, %c0_2] : memref<48x64xbf16, #tpu.memory_space<vmem>>, vector<48x64xbf16>
    %cst = arith.constant dense<0.000000e+00> : vector<128x64xf32>
    %2 = tpu.matmul %0, %1, %cst {dimension_numbers = #tpu.dot_dimension_numbers<[1], [0], [0], [1], [0, 0, 1, 1], [], []>} : vector<128x48xbf16>, vector<48x64xbf16>, vector<128x64xf32> -> vector<128x64xf32>
    %c0_3 = arith.constant 0 : index
    %c0_4 = arith.constant 0 : index
    %3 = vector.load %arg3[%c0_3, %c0_4] : memref<1x64xf32, #tpu.memory_space<vmem>>, vector<1x64xf32>
    %4 = vector.broadcast %3 : vector<1x64xf32> to vector<128x64xf32>
    %5 = arith.addf %2, %4 : vector<128x64xf32>
    %cst_5 = arith.constant 0.000000e+00 : f32
    %6 = vector.broadcast %cst_5 : f32 to vector<128x64xf32>
    %7 = arith.maximumf %5, %6 : vector<128x64xf32>
    %8 = vector.extract_strided_slice %7 {offsets = [0, 0], sizes = [128, 32], strides = [1, 1]} : vector<128x64xf32> to vector<128x32xf32>
    %9 = vector.extract_strided_slice %7 {offsets = [0, 32], sizes = [128, 32], strides = [1, 1]} : vector<128x64xf32> to vector<128x32xf32>
    %10 = arith.addf %8, %9 : vector<128x32xf32>
    %cst_6 = arith.constant 5.000000e-01 : f32
    %11 = vector.broadcast %cst_6 : f32 to vector<128x32xf32>
    %12 = arith.mulf %10, %11 : vector<128x32xf32>
    %13 = arith.truncf %12 : vector<128x32xf32> to vector<128x32xbf16>
    %c0_7 = arith.constant 0 : index
    %c0_8 = arith.constant 0 : index
    %14 = vector.load %arg4[%c0_7, %c0_8] : memref<32x16xbf16, #tpu.memory_space<vmem>>, vector<32x16xbf16>
    %cst_9 = arith.constant dense<0.000000e+00> : vector<128x16xf32>
    %15 = tpu.matmul %13, %14, %cst_9 {dimension_numbers = #tpu.dot_dimension_numbers<[1], [0], [0], [1], [0, 0, 1, 1], [], []>} : vector<128x32xbf16>, vector<32x16xbf16>, vector<128x16xf32> -> vector<128x16xf32>
    %c0_10 = arith.constant 0 : index
    %c0_11 = arith.constant 0 : index
    %16 = vector.load %arg5[%c0_10, %c0_11] : memref<1x16xf32, #tpu.memory_space<vmem>>, vector<1x16xf32>
    %17 = vector.broadcast %16 : vector<1x16xf32> to vector<128x16xf32>
    %18 = arith.addf %15, %17 : vector<128x16xf32>
    %cst_12 = arith.constant 0.000000e+00 : f32
    %19 = vector.broadcast %cst_12 : f32 to vector<128x16xf32>
    %20 = arith.maximumf %18, %19 : vector<128x16xf32>
    %21 = arith.truncf %20 : vector<128x16xf32> to vector<128x16xbf16>
    %c0_13 = arith.constant 0 : index
    %c0_14 = arith.constant 0 : index
    %22 = vector.load %arg6[%c0_13, %c0_14] : memref<16x8xbf16, #tpu.memory_space<vmem>>, vector<16x8xbf16>
    %cst_15 = arith.constant dense<0.000000e+00> : vector<128x8xf32>
    %23 = tpu.matmul %21, %22, %cst_15 {dimension_numbers = #tpu.dot_dimension_numbers<[1], [0], [0], [1], [0, 0, 1, 1], [], []>} : vector<128x16xbf16>, vector<16x8xbf16>, vector<128x8xf32> -> vector<128x8xf32>
    %c0_16 = arith.constant 0 : index
    %c0_17 = arith.constant 0 : index
    %24 = vector.load %arg7[%c0_16, %c0_17] : memref<1x8xf32, #tpu.memory_space<vmem>>, vector<1x8xf32>
    %25 = vector.broadcast %24 : vector<1x8xf32> to vector<128x8xf32>
    %26 = arith.addf %23, %25 : vector<128x8xf32>
    %cst_18 = arith.constant 0.000000e+00 : f32
    %27 = vector.broadcast %cst_18 : f32 to vector<128x8xf32>
    %28 = arith.maximumf %26, %27 : vector<128x8xf32>
    %c0_19 = arith.constant 0 : index
    %c0_20 = arith.constant 0 : index
    %29 = vector.load %arg8[%c0_19, %c0_20] : memref<1x8xf32, #tpu.memory_space<vmem>>, vector<1x8xf32>
    %30 = vector.broadcast %29 : vector<1x8xf32> to vector<128x8xf32>
    %31 = arith.mulf %28, %30 : vector<128x8xf32>
    %cst_21 = arith.constant dense<0.000000e+00> : vector<128xf32>
    %32 = vector.multi_reduction <add>, %31, %cst_21 [1] : vector<128x8xf32> to vector<128xf32>
    %33 = vector.shape_cast %32 : vector<128xf32> to vector<128x1xf32>
    %c0_22 = arith.constant 0 : index
    %c0_23 = arith.constant 0 : index
    %34 = memref.load %arg9[%c0_22, %c0_23] : memref<1x1xf32, #tpu.memory_space<smem>>
    %35 = vector.broadcast %34 : f32 to vector<128x1xf32>
    %36 = arith.addf %33, %35 : vector<128x1xf32>
    %cst_24 = arith.constant 0.000000e+00 : f32
    %37 = vector.broadcast %cst_24 : f32 to vector<128x1xf32>
    %38 = arith.subf %37, %36 : vector<128x1xf32>
    %39 = math.exp %38 : vector<128x1xf32>
    %cst_25 = arith.constant 1.000000e+00 : f32
    %40 = vector.broadcast %cst_25 : f32 to vector<128x1xf32>
    %41 = arith.addf %40, %39 : vector<128x1xf32>
    %cst_26 = arith.constant 1.000000e+00 : f32
    %42 = vector.broadcast %cst_26 : f32 to vector<128x1xf32>
    %43 = arith.divf %42, %41 : vector<128x1xf32>
    %c0_27 = arith.constant 0 : index
    %c0_28 = arith.constant 0 : index
    %44 = vector.load %arg10[%c0_27, %c0_28] : memref<128x1xf32, #tpu.memory_space<vmem>>, vector<128x1xf32>
    tpu.vector_store %arg10[%c0_27, %c0_28], %43 {strides = array<i32>} : memref<128x1xf32, #tpu.memory_space<vmem>>, vector<128x1xf32>,
    return
  }
  func.func @transform_0(%arg0: i32) -> (i32, i32) {
    %c0_i32 = arith.constant 0 : i32
    %c0_i32_0 = arith.constant 0 : i32
    return %arg0, %c0_i32 : i32, i32
  }
  func.func @transform_1(%arg0: i32) -> (i32, i32) {
    %c0_i32 = arith.constant 0 : i32
    %c0_i32_0 = arith.constant 0 : i32
    %c0_i32_1 = arith.constant 0 : i32
    return %c0_i32, %c0_i32_0 : i32, i32
  }
  func.func @transform_2(%arg0: i32) -> (i32, i32) {
    %c0_i32 = arith.constant 0 : i32
    %c0_i32_0 = arith.constant 0 : i32
    %c0_i32_1 = arith.constant 0 : i32
    return %c0_i32, %c0_i32_0 : i32, i32
  }
  func.func @transform_3(%arg0: i32) -> (i32, i32) {
    %c0_i32 = arith.constant 0 : i32
    %c0_i32_0 = arith.constant 0 : i32
    %c0_i32_1 = arith.constant 0 : i32
    return %c0_i32, %c0_i32_0 : i32, i32
  }
  func.func @transform_4(%arg0: i32) -> (i32, i32) {
    %c0_i32 = arith.constant 0 : i32
    %c0_i32_0 = arith.constant 0 : i32
    %c0_i32_1 = arith.constant 0 : i32
    return %c0_i32, %c0_i32_0 : i32, i32
  }
  func.func @transform_5(%arg0: i32) -> (i32, i32) {
    %c0_i32 = arith.constant 0 : i32
    %c0_i32_0 = arith.constant 0 : i32
    %c0_i32_1 = arith.constant 0 : i32
    return %c0_i32, %c0_i32_0 : i32, i32
  }
  func.func @transform_6(%arg0: i32) -> (i32, i32) {
    %c0_i32 = arith.constant 0 : i32
    %c0_i32_0 = arith.constant 0 : i32
    %c0_i32_1 = arith.constant 0 : i32
    return %c0_i32, %c0_i32_0 : i32, i32
  }
  func.func @transform_7(%arg0: i32) -> (i32, i32) {
    %c0_i32 = arith.constant 0 : i32
    %c0_i32_0 = arith.constant 0 : i32
    %c0_i32_1 = arith.constant 0 : i32
    return %c0_i32, %c0_i32_0 : i32, i32
  }
  func.func @transform_8(%arg0: i32) -> (i32, i32) {
    %c0_i32 = arith.constant 0 : i32
    %c0_i32_0 = arith.constant 0 : i32
    %c0_i32_1 = arith.constant 0 : i32
    return %c0_i32, %c0_i32_0 : i32, i32
  }
  func.func @transform_9(%arg0: i32) -> (i32, i32) {
    %c0_i32 = arith.constant 0 : i32
    %c0_i32_0 = arith.constant 0 : i32
    return %arg0, %c0_i32 : i32, i32
  }
}

</mosaic_0001>

<llo_original>
// kernel: tpu_custom_call.1
$region0: #{tpu_custom_call.1}
  #allocation0 [shape = 'u32[]', space=smem, size = 0x4, offset = 0x4, fixed_abs, tag = 'smem constant byte address 0x4 - core index']
  #allocation1 [shape = 'u32[144,128]{1,0:T(1,128)}', space=vmem, size = 0x12000, scoped, tag = 'internal scratch']
  #allocation2 [shape = 'f32[1,1]{1,0:T(1,128)S(6)}', space=smem, size = 0x200, scoped, tag = 'scoped memory for tpu_custom_call.1']
  %s0 = inlined_call_operand.vmem [shape: bf16[256,48], index: 0, kind: input, shape index: {}]
  %s1 = inlined_call_operand.vmem [shape: bf16[48,64], index: 1, kind: input, shape index: {}]
  %s2 = inlined_call_operand.vmem [shape: f32[1,64], index: 2, kind: input, shape index: {}]
  %s3 = inlined_call_operand.vmem [shape: bf16[32,16], index: 3, kind: input, shape index: {}]
  %s4 = inlined_call_operand.vmem [shape: f32[1,16], index: 4, kind: input, shape index: {}]
  %s5 = inlined_call_operand.vmem [shape: bf16[16,8], index: 5, kind: input, shape index: {}]
  %s6 = inlined_call_operand.vmem [shape: f32[1,8], index: 6, kind: input, shape index: {}]
  %s7 = inlined_call_operand.vmem [shape: f32[1,8], index: 7, kind: input, shape index: {}]
  %s8 = inlined_call_operand.<no memory space> [shape: f32[1,1], index: 8, kind: input, shape index: {}]
  %s9 = inlined_call_operand.vmem [shape: f32[256,1], index: 9, kind: output, shape index: {}]
  %s10 = sld [smem:[#allocation0]]
  $region69: #{tpu_custom_call.1} parent=0
    _
  %s12 = ssub.s32 1, %s10
  %s13 = scalar_select 0, %s12, %s10
  %14 = sst [smem:[#allocation2]] %s8
  loop: start=0, step=1, limit=4
  $region2: #{tpu_custom_call.1} parent=0 // loop_pre_header
    _
  $region3: #{tpu_custom_call.1} parent=0 // loop_header
    %s16 = sphi 0, %s20
    %p17 = scmp.ge.s32.totalorder %s16, 4
    %s26 = sphi 0, %s28
    %s29 = sphi 0, %s26
    %s30 = sphi 0, %s29
    %s46 = sphi 0, %s30
    %s50 = sphi 0, %s50
    %s52 = sphi 0, %s50
    %s53 = sphi 0, %s52
    %s67 = sphi 0, %s53
    %s71 = sphi 0, %s71
    %s73 = sphi 0, %s71
    %s74 = sphi 0, %s73
    %s88 = sphi 0, %s74
    %s92 = sphi 0, %s92
    %s94 = sphi 0, %s92
    %s95 = sphi 0, %s94
    %s109 = sphi 0, %s95
    %s113 = sphi 0, %s113
    %s115 = sphi 0, %s113
    %s116 = sphi 0, %s115
    %s130 = sphi 0, %s116
    %s134 = sphi 0, %s134
    %s136 = sphi 0, %s134
    %s137 = sphi 0, %s136
    %s151 = sphi 0, %s137
    %s155 = sphi 0, %s155
    %s157 = sphi 0, %s155
    %s158 = sphi 0, %s157
    %s172 = sphi 0, %s158
    %s176 = sphi 0, %s176
    %s178 = sphi 0, %s176
    %s179 = sphi 0, %s178
    %s193 = sphi 0, %s179
    %s197 = sphi 0, %s197
    %s199 = sphi 0, %s197
    %s200 = sphi 0, %s199
    %s214 = sphi 0, %s200
    %s220 = sphi 0, %s222
    %s223 = sphi 0, %s220
    %s224 = sphi 0, %s223
    %s240 = sphi 0, %s224
  $region4: #{tpu_custom_call.1} parent=0 // loop_header_branch
    %19 = sbr.rel (%p17) target = $region8
  $region5: #{tpu_custom_call.1} parent=0 // loop_body
    %s21 = ssub.s32 %s16, 1
    %s22 = ssub.s32 %s16, 2
    %s23 = sadd.s32 %s16, 1
    %s24 = ssub.s32 %s16, %s23
    %p25 = scmp.eq.s32.totalorder %s24, 0
    %s27 = sadd.s32 %s26, 1
    %s28 = scalar_select %p25, %s26, %s27
    %p31 = pneg %p25
    %p32 = scmp.eq.s32.totalorder %s16, 1
    %p33 = por %p31, %p32
    %p34 = scmp.ne.s32.totalorder %s26, %s29
    %p35 = scmp.eq.s32.totalorder %s16, 0
    %p36 = por %p34, %p35
    %p37 = scmp.ne.s32.totalorder %s26, %s29
    %p38 = scmp.eq.s32.totalorder %s21, 1
    %p39 = por %p37, %p38
    %p40 = scmp.ne.s32.totalorder %s29, %s30
    %p41 = scmp.eq.s32.totalorder %s21, 0
    %p42 = por %p40, %p41
    %p43 = scmp.ne.s32.totalorder %s29, %s30
    %p44 = scmp.eq.s32.totalorder %s22, 1
    %p45 = por %p43, %p44
    %p47 = scmp.ne.s32.totalorder %s30, %s46
    %p48 = scmp.eq.s32.totalorder %s22, 0
    %p49 = por %p47, %p48
    %s51 = sadd.s32 %s50, 1
    %p54 = scmp.eq.s32.totalorder %s16, 1
    %p55 = scmp.ne.s32.totalorder %s50, %s52
    %p56 = scmp.eq.s32.totalorder %s16, 0
    %p57 = por %p55, %p56
    %p58 = scmp.ne.s32.totalorder %s50, %s52
    %p59 = scmp.eq.s32.totalorder %s21, 1
    %p60 = por %p58, %p59
    %p61 = scmp.ne.s32.totalorder %s52, %s53
    %p62 = scmp.eq.s32.totalorder %s21, 0
    %p63 = por %p61, %p62
    %p64 = scmp.ne.s32.totalorder %s52, %s53
    %p65 = scmp.eq.s32.totalorder %s22, 1
    %p66 = por %p64, %p65
    %p68 = scmp.ne.s32.totalorder %s53, %s67
    %p69 = scmp.eq.s32.totalorder %s22, 0
    %p70 = por %p68, %p69
    %s72 = sadd.s32 %s71, 1
    %p75 = scmp.eq.s32.totalorder %s16, 1
    %p76 = scmp.ne.s32.totalorder %s71, %s73
    %p77 = scmp.eq.s32.totalorder %s16, 0
    %p78 = por %p76, %p77
    %p79 = scmp.ne.s32.totalorder %s71, %s73
    %p80 = scmp.eq.s32.totalorder %s21, 1
    %p81 = por %p79, %p80
    %p82 = scmp.ne.s32.totalorder %s73, %s74
    %p83 = scmp.eq.s32.totalorder %s21, 0
    %p84 = por %p82, %p83
    %p85 = scmp.ne.s32.totalorder %s73, %s74
    %p86 = scmp.eq.s32.totalorder %s22, 1
    %p87 = por %p85, %p86
    %p89 = scmp.ne.s32.totalorder %s74, %s88
    %p90 = scmp.eq.s32.totalorder %s22, 0
    %p91 = por %p89, %p90
    %s93 = sadd.s32 %s92, 1
    %p96 = scmp.eq.s32.totalorder %s16, 1
    %p97 = scmp.ne.s32.totalorder %s92, %s94
    %p98 = scmp.eq.s32.totalorder %s16, 0
    %p99 = por %p97, %p98
    %p100 = scmp.ne.s32.totalorder %s92, %s94
    %p101 = scmp.eq.s32.totalorder %s21, 1
    %p102 = por %p100, %p101
    %p103 = scmp.ne.s32.totalorder %s94, %s95
    %p104 = scmp.eq.s32.totalorder %s21, 0
    %p105 = por %p103, %p104
    %p106 = scmp.ne.s32.totalorder %s94, %s95
    %p107 = scmp.eq.s32.totalorder %s22, 1
    %p108 = por %p106, %p107
    %p110 = scmp.ne.s32.totalorder %s95, %s109
    %p111 = scmp.eq.s32.totalorder %s22, 0
    %p112 = por %p110, %p111
    %s114 = sadd.s32 %s113, 1
    %p117 = scmp.eq.s32.totalorder %s16, 1
    %p118 = scmp.ne.s32.totalorder %s113, %s115
    %p119 = scmp.eq.s32.totalorder %s16, 0
    %p120 = por %p118, %p119
    %p121 = scmp.ne.s32.totalorder %s113, %s115
    %p122 = scmp.eq.s32.totalorder %s21, 1
    %p123 = por %p121, %p122
    %p124 = scmp.ne.s32.totalorder %s115, %s116
    %p125 = scmp.eq.s32.totalorder %s21, 0
    %p126 = por %p124, %p125
    %p127 = scmp.ne.s32.totalorder %s115, %s116
    %p128 = scmp.eq.s32.totalorder %s22, 1
    %p129 = por %p127, %p128
    %p131 = scmp.ne.s32.totalorder %s116, %s130
    %p132 = scmp.eq.s32.totalorder %s22, 0
    %p133 = por %p131, %p132
    %s135 = sadd.s32 %s134, 1
    %p138 = scmp.eq.s32.totalorder %s16, 1
    %p139 = scmp.ne.s32.totalorder %s134, %s136
    %p140 = scmp.eq.s32.totalorder %s16, 0
    %p141 = por %p139, %p140
    %p142 = scmp.ne.s32.totalorder %s134, %s136
    %p143 = scmp.eq.s32.totalorder %s21, 1
    %p144 = por %p142, %p143
    %p145 = scmp.ne.s32.totalorder %s136, %s137
    %p146 = scmp.eq.s32.totalorder %s21, 0
    %p147 = por %p145, %p146
    %p148 = scmp.ne.s32.totalorder %s136, %s137
    %p149 = scmp.eq.s32.totalorder %s22, 1
    %p150 = por %p148, %p149
    %p152 = scmp.ne.s32.totalorder %s137, %s151
    %p153 = scmp.eq.s32.totalorder %s22, 0
    %p154 = por %p152, %p153
    %s156 = sadd.s32 %s155, 1
    %p159 = scmp.eq.s32.totalorder %s16, 1
    %p160 = scmp.ne.s32.totalorder %s155, %s157
    %p161 = scmp.eq.s32.totalorder %s16, 0
    %p162 = por %p160, %p161
    %p163 = scmp.ne.s32.totalorder %s155, %s157
    %p164 = scmp.eq.s32.totalorder %s21, 1
    %p165 = por %p163, %p164
    %p166 = scmp.ne.s32.totalorder %s157, %s158
    %p167 = scmp.eq.s32.totalorder %s21, 0
    %p168 = por %p166, %p167
    %p169 = scmp.ne.s32.totalorder %s157, %s158
    %p170 = scmp.eq.s32.totalorder %s22, 1
    %p171 = por %p169, %p170
    %p173 = scmp.ne.s32.totalorder %s158, %s172
    %p174 = scmp.eq.s32.totalorder %s22, 0
    %p175 = por %p173, %p174
    %s177 = sadd.s32 %s176, 1
    %p180 = scmp.eq.s32.totalorder %s16, 1
    %p181 = scmp.ne.s32.totalorder %s176, %s178
    %p182 = scmp.eq.s32.totalorder %s16, 0
    %p183 = por %p181, %p182
    %p184 = scmp.ne.s32.totalorder %s176, %s178
    %p185 = scmp.eq.s32.totalorder %s21, 1
    %p186 = por %p184, %p185
    %p187 = scmp.ne.s32.totalorder %s178, %s179
    %p188 = scmp.eq.s32.totalorder %s21, 0
    %p189 = por %p187, %p188
    %p190 = scmp.ne.s32.totalorder %s178, %s179
    %p191 = scmp.eq.s32.totalorder %s22, 1
    %p192 = por %p190, %p191
    %p194 = scmp.ne.s32.totalorder %s179, %s193
    %p195 = scmp.eq.s32.totalorder %s22, 0
    %p196 = por %p194, %p195
    %s198 = sadd.s32 %s197, 1
    %p201 = scmp.eq.s32.totalorder %s16, 1
    %p202 = scmp.ne.s32.totalorder %s197, %s199
    %p203 = scmp.eq.s32.totalorder %s16, 0
    %p204 = por %p202, %p203
    %p205 = scmp.ne.s32.totalorder %s197, %s199
    %p206 = scmp.eq.s32.totalorder %s21, 1
    %p207 = por %p205, %p206
    %p208 = scmp.ne.s32.totalorder %s199, %s200
    %p209 = scmp.eq.s32.totalorder %s21, 0
    %p210 = por %p208, %p209
    %p211 = scmp.ne.s32.totalorder %s199, %s200
    %p212 = scmp.eq.s32.totalorder %s22, 1
    %p213 = por %p211, %p212
    %p215 = scmp.ne.s32.totalorder %s200, %s214
    %p216 = scmp.eq.s32.totalorder %s22, 0
    %p217 = por %p215, %p216
    %s218 = ssub.s32 %s16, %s23
    %p219 = scmp.eq.s32.totalorder %s218, 0
    %s221 = sadd.s32 %s220, 1
    %s222 = scalar_select %p219, %s220, %s221
    %p225 = pneg %p219
    %p226 = scmp.eq.s32.totalorder %s16, 1
    %p227 = por %p225, %p226
    %p228 = scmp.ne.s32.totalorder %s220, %s223
    %p229 = scmp.eq.s32.totalorder %s16, 0
    %p230 = por %p228, %p229
    %p231 = scmp.ne.s32.totalorder %s220, %s223
    %p232 = scmp.eq.s32.totalorder %s21, 1
    %p233 = por %p231, %p232
    %p234 = scmp.ne.s32.totalorder %s223, %s224
    %p235 = scmp.eq.s32.totalorder %s21, 0
    %p236 = por %p234, %p235
    %p237 = scmp.ne.s32.totalorder %s223, %s224
    %p238 = scmp.eq.s32.totalorder %s22, 1
    %p239 = por %p237, %p238
    %p241 = scmp.ne.s32.totalorder %s224, %s240
    %p242 = scmp.eq.s32.totalorder %s22, 0
    %p243 = por %p241, %p242
    %p244 = scmp.le.s32.totalorder 1, %s16
    %p245 = scmp.lt.s32.totalorder %s16, 3
    %p246 = pnand %p244, %p245
    %p247 = pneg %p246
    // Predicated region
    $region9: #{tpu_custom_call.1} parent=5 // pred_check
      _
    $region10: #{tpu_custom_call.1} parent=5 // pred_check_branch
      %249 = sbr.rel (%p246) target = $region12
    $region11: #{tpu_custom_call.1} parent=5 // pred_region
      %s250 = ssub.s32 %s16, 1
      // Predicated region
      $region13: #{tpu_custom_call.1} parent=11 // pred_check
        %p251 = pneg %p63
      $region14: #{tpu_custom_call.1} parent=11 // pred_check_branch
        %253 = sbr.rel (%p251) target = $region16
      $region15: #{tpu_custom_call.1} parent=11 // pred_region
        _
      $region16: #{tpu_custom_call.1} parent=11 // pred_fallthru
        _
      // Predicated region
      $region17: #{tpu_custom_call.1} parent=11 // pred_check
        %p254 = pneg %p84
      $region18: #{tpu_custom_call.1} parent=11 // pred_check_branch
        %256 = sbr.rel (%p254) target = $region20
      $region19: #{tpu_custom_call.1} parent=11 // pred_region
        _
      $region20: #{tpu_custom_call.1} parent=11 // pred_fallthru
        _
      // Predicated region
      $region21: #{tpu_custom_call.1} parent=11 // pred_check
        %p257 = pneg %p105
      $region22: #{tpu_custom_call.1} parent=11 // pred_check_branch
        %259 = sbr.rel (%p257) target = $region24
      $region23: #{tpu_custom_call.1} parent=11 // pred_region
        _
      $region24: #{tpu_custom_call.1} parent=11 // pred_fallthru
        _
      // Predicated region
      $region25: #{tpu_custom_call.1} parent=11 // pred_check
        %p260 = pneg %p126
      $region26: #{tpu_custom_call.1} parent=11 // pred_check_branch
        %262 = sbr.rel (%p260) target = $region28
      $region27: #{tpu_custom_call.1} parent=11 // pred_region
        _
      $region28: #{tpu_custom_call.1} parent=11 // pred_fallthru
        _
      // Predicated region
      $region29: #{tpu_custom_call.1} parent=11 // pred_check
        %p263 = pneg %p147
      $region30: #{tpu_custom_call.1} parent=11 // pred_check_branch
        %265 = sbr.rel (%p263) target = $region32
      $region31: #{tpu_custom_call.1} parent=11 // pred_region
        _
      $region32: #{tpu_custom_call.1} parent=11 // pred_fallthru
        _
      // Predicated region
      $region33: #{tpu_custom_call.1} parent=11 // pred_check
        %p266 = pneg %p168
      $region34: #{tpu_custom_call.1} parent=11 // pred_check_branch
        %268 = sbr.rel (%p266) target = $region36
      $region35: #{tpu_custom_call.1} parent=11 // pred_region
        _
      $region36: #{tpu_custom_call.1} parent=11 // pred_fallthru
        _
      // Predicated region
      $region37: #{tpu_custom_call.1} parent=11 // pred_check
        %p269 = pneg %p189
      $region38: #{tpu_custom_call.1} parent=11 // pred_check_branch
        %271 = sbr.rel (%p269) target = $region40
      $region39: #{tpu_custom_call.1} parent=11 // pred_region
        _
      $region40: #{tpu_custom_call.1} parent=11 // pred_fallthru
        _
      // Predicated region
      $region41: #{tpu_custom_call.1} parent=11 // pred_check
        %p272 = pneg %p210
      $region42: #{tpu_custom_call.1} parent=11 // pred_check_branch
        %274 = sbr.rel (%p272) target = $region44
      $region43: #{tpu_custom_call.1} parent=11 // pred_region
        _
      $region44: #{tpu_custom_call.1} parent=11 // pred_fallthru
        _
    $region12: #{tpu_custom_call.1} parent=5 // pred_fallthru
      _
    %p275 = scmp.lt.s32.totalorder %s16, 2
    // Predicated region
    $region45: #{tpu_custom_call.1} parent=5 // pred_check
      %p276 = pneg %p275
    $region46: #{tpu_custom_call.1} parent=5 // pred_check_branch
      %278 = sbr.rel (%p276) target = $region48
    $region47: #{tpu_custom_call.1} parent=5 // pred_region
      // Predicated region
      $region49: #{tpu_custom_call.1} parent=47 // pred_check
        %p279 = pneg %p36
      $region50: #{tpu_custom_call.1} parent=47 // pred_check_branch
        %281 = sbr.rel (%p279) target = $region52
      $region51: #{tpu_custom_call.1} parent=47 // pred_region
        %s282 = smul.u32 16, %s16
        %p283 = scmp.lt.s32.totalorder %s282, 31
        %s284 = scalar_select %p283, %s282, 31
        %s285 = smul.addr %s284, 4
        %s286 = scalar_lea.vmem %s0, %s285
        %s287 = smul.u32 16, %s16
      $region52: #{tpu_custom_call.1} parent=47 // pred_fallthru
        _
    $region48: #{tpu_custom_call.1} parent=5 // pred_fallthru
      _
    %p288 = scmp.le.s32.totalorder 1, %s16
    %p289 = scmp.lt.s32.totalorder %s16, 3
    %p290 = pnand %p288, %p289
    %p291 = pneg %p290
    // Predicated region
    $region53: #{tpu_custom_call.1} parent=5 // pred_check
      _
    $region54: #{tpu_custom_call.1} parent=5 // pred_check_branch
      %293 = sbr.rel (%p290) target = $region56
    $region55: #{tpu_custom_call.1} parent=5 // pred_region
      %s294 = ssub.s32 %s16, 1
      %s295 = smul.u32 16, %s21
      %p296 = scmp.lt.s32.totalorder %s295, 31
      %s297 = scalar_select %p296, %s295, 31
      %s298 = smul.addr %s297, 4
      %s299 = scalar_lea.vmem %s0, %s298
      %p300 = pneg %p42
      %p301 = pneg %p39
      %p302 = pneg %p63
      %p303 = pneg %p60
      %p304 = pneg %p84
      %p305 = pneg %p81
      %p306 = pneg %p105
      %p307 = pneg %p102
      %p308 = pneg %p126
      %p309 = pneg %p123
      %p310 = pneg %p147
      %p311 = pneg %p144
      %p312 = pneg %p168
      %p313 = pneg %p165
      %p314 = pneg %p189
      %p315 = pneg %p186
      %p316 = pneg %p210
      %p317 = pneg %p207
      %p318 = pneg %p236
      %p319 = pneg %p233
      %s320 = smul.u32 16, %s21
      %p321 = scmp.lt.s32.totalorder %s320, 31
      %s322 = scalar_select %p321, %s320, 31
      %s323 = smul.addr %s322, 8
      %s324 = scalar_lea.vmem %s9, %s323
      %s325 = smul.u32 16, %s21
      %p326 = scmp.lt.s32.totalorder %s325, 31
      %s327 = scalar_select %p326, %s325, 31
      %s328 = smul.addr %s327, 4
      %s329 = scalar_lea.vmem %s0, %s328
      %s330 = smul.u32 16, %s21
      %s331 = smul.u32 16, %s21
      %p332 = scmp.lt.s32.totalorder %s331, 31
      %s333 = scalar_select %p332, %s331, 31
      %s334 = smul.addr %s333, 8
      %s335 = scalar_lea.vmem %s9, %s334
      %s336 = smul.u32 16, %s21
      %v338 = vld [vmem:[%s329] sm:$0xf]
      %v339 = vld [vmem:[%s329 + $0x4] sm:$0xf]
      %v340 = vld [vmem:[%s329 + $0x8] sm:$0xf]
      %v341 = vld [vmem:[%s329 + $0xc] sm:$0xf]
      %v342 = vld [vmem:[%s329 + $0x10] sm:$0xf]
      %v343 = vld [vmem:[%s329 + $0x14] sm:$0xf]
      %v344 = vld [vmem:[%s329 + $0x18] sm:$0xf]
      %v345 = vld [vmem:[%s329 + $0x1c] sm:$0xf]
      %v346 = vld [vmem:[%s329 + $0x20] sm:$0xf]
      %v347 = vld [vmem:[%s329 + $0x24] sm:$0xf]
      %v348 = vld [vmem:[%s329 + $0x28] sm:$0xf]
      %v349 = vld [vmem:[%s329 + $0x2c] sm:$0xf]
      %v350 = vld [vmem:[%s329 + $0x30] sm:$0xf]
      %v351 = vld [vmem:[%s329 + $0x34] sm:$0xf]
      %v352 = vld [vmem:[%s329 + $0x38] sm:$0xf]
      %v353 = vld [vmem:[%s329 + $0x3c] sm:$0xf]
      %v354 = vld [vmem:[%s1] sm:$0xf]
      %v355 = vld [vmem:[%s1 + $0x4] sm:$0xf]
      %v356 = vld [vmem:[%s1 + $0x8] sm:$0xf]
      %v357 = vld [vmem:[%s1 + $0xc] sm:$0xf]
      %v358 = vld [vmem:[%s1 + $0x10] sm:$0xf]
      %v359 = vld [vmem:[%s1 + $0x14] sm:$0xf]
      %v360 = vld [vmem:[%s2] sm:$0x1]
      %v362 = vlaneseq
      %v363 = vshrl.u32 %v362, 7
      %v364 = vsub.s32 0, %v363
      %v365 = vrot.slane %v360, %v364
      %v383 = vunpack.c.l.b16 %v338
      %v384 = vunpack.c.l.b16 %v339
      %v385 = vunpack.c.l.b16 %v340
      %v386 = vunpack.c.l.b16 %v341
      %v387 = vunpack.c.l.b16 %v342
      %v388 = vunpack.c.l.b16 %v343
      %v389 = vunpack.c.l.b16 %v344
      %v390 = vunpack.c.l.b16 %v345
      %v391 = vunpack.c.l.b16 %v346
      %v392 = vunpack.c.l.b16 %v347
      %v393 = vunpack.c.l.b16 %v348
      %v394 = vunpack.c.l.b16 %v349
      %v395 = vunpack.c.l.b16 %v350
      %v396 = vunpack.c.l.b16 %v351
      %v397 = vunpack.c.l.b16 %v352
      %v398 = vunpack.c.l.b16 %v353
      %v399 = vpack.c.b16 %v384, %v383
      %v400 = vpack.c.b16 %v386, %v385
      %v401 = vpack.c.b16 %v388, %v387
      %v402 = vpack.c.b16 %v390, %v389
      %v403 = vpack.c.b16 %v392, %v391
      %v404 = vpack.c.b16 %v394, %v393
      %v405 = vpack.c.b16 %v396, %v395
      %v406 = vpack.c.b16 %v398, %v397
      %v413 = vunpack.c.l.b16 %v354
      %v414 = vunpack.c.l.b16 %v355
      %v415 = vunpack.c.l.b16 %v356
      %v416 = vunpack.c.l.b16 %v357
      %v417 = vunpack.c.l.b16 %v358
      %v418 = vunpack.c.l.b16 %v359
      %v419 = vpack.c.b16 %v414, %v413
      %v420 = vpack.c.b16 %v416, %v415
      %v421 = vpack.c.b16 %v418, %v417
      %vm425 = vcmask 392192
      %v427 = vsel %vm425, %v399, 0
      %v430 = vsel %vm425, %v400, 0
      %v433 = vsel %vm425, %v401, 0
      %v436 = vsel %vm425, %v402, 0
      %v439 = vsel %vm425, %v403, 0
      %v442 = vsel %vm425, %v404, 0
      %v445 = vsel %vm425, %v405, 0
      %v448 = vsel %vm425, %v406, 0
      %450 = vmatprep.subr.bf16.mxu0 0
      %451 = vmatpush1.bf16.msra.mxu0 %v419
      %452 = vmatprep.subr.bf16.mxu0 0
      %453 = vmatpush1.bf16.msra.mxu0 %v420
      %454 = vmatprep.subr.bf16.mxu0 0
      %455 = vmatpush1.bf16.msra.mxu0 %v421
      %456 = vmatprep.subr.bf16.mxu0 0
      %457 = vmatpush1.bf16.msra.mxu0 0
      %458 = vmatprep.subr.bf16.mxu0 0
      %459 = vmatpush1.bf16.msra.mxu0 0
      %460 = vmatprep.subr.bf16.mxu0 0
      %461 = vmatpush1.bf16.msra.mxu0 0
      %462 = vmatprep.subr.bf16.mxu0 0
      %463 = vmatpush1.bf16.msra.mxu0 0
      %464 = vmatprep.subr.bf16.mxu0 0
      %465 = vmatpush1.bf16.msra.mxu0 0
      %466 = vmatprep.subr.bf16.mxu0 0
      %467 = vmatpush1.bf16.msra.mxu0 0
      %468 = vmatprep.subr.bf16.mxu0 0
      %469 = vmatpush1.bf16.msra.mxu0 0
      %470 = vmatprep.subr.bf16.mxu0 0
      %471 = vmatpush1.bf16.msra.mxu0 0
      %472 = vmatprep.subr.bf16.mxu0 0
      %473 = vmatpush1.bf16.msra.mxu0 0
      %474 = vmatprep.subr.bf16.mxu0 0
      %475 = vmatpush1.bf16.msra.mxu0 0
      %476 = vmatprep.subr.bf16.mxu0 0
      %477 = vmatpush1.bf16.msra.mxu0 0
      %478 = vmatprep.subr.bf16.mxu0 0
      %479 = vmatpush1.bf16.msra.mxu0 0
      %480 = vmatprep.subr.bf16.mxu0 0
      %481 = vmatpush1.bf16.msra.mxu0 0
      %482 = vmatprep.mubr.bf16.mxu0 0
      %483 = vmatmul.mubr.bf16.gmra.mrb[0].mxu0 %v427
      %v484 = vpop.f32.mrb[0].mxu0
      %v485 = vadd.f32 %v365, %v484
      %v486 = vpop.f32.mrb[0].mxu0
      %v487 = vpop.f32.mrb[0].mxu0
      %v488 = vadd.f32 %v365, %v487
      %v489 = vpop.f32.mrb[0].mxu0
      %490 = vmatprep.mubr.bf16.mxu0 0
      %491 = vmatmul.mubr.bf16.gmra.mrb[0].mxu0 %v430
      %v492 = vpop.f32.mrb[0].mxu0
      %v493 = vadd.f32 %v365, %v492
      %v494 = vpop.f32.mrb[0].mxu0
      %v495 = vpop.f32.mrb[0].mxu0
      %v496 = vadd.f32 %v365, %v495
      %v497 = vpop.f32.mrb[0].mxu0
      %498 = vmatprep.mubr.bf16.mxu0 0
      %499 = vmatmul.mubr.bf16.gmra.mrb[0].mxu0 %v433
      %v500 = vpop.f32.mrb[0].mxu0
      %v501 = vadd.f32 %v365, %v500
      %v502 = vpop.f32.mrb[0].mxu0
      %v503 = vpop.f32.mrb[0].mxu0
      %v504 = vadd.f32 %v365, %v503
      %v505 = vpop.f32.mrb[0].mxu0
      %506 = vmatprep.mubr.bf16.mxu0 0
      %507 = vmatmul.mubr.bf16.gmra.mrb[0].mxu0 %v436
      %v508 = vpop.f32.mrb[0].mxu0
      %v509 = vadd.f32 %v365, %v508
      %v510 = vpop.f32.mrb[0].mxu0
      %v511 = vpop.f32.mrb[0].mxu0
      %v512 = vadd.f32 %v365, %v511
      %v513 = vpop.f32.mrb[0].mxu0
      %514 = vmatprep.mubr.bf16.mxu0 0
      %515 = vmatmul.mubr.bf16.gmra.mrb[0].mxu0 %v439
      %v516 = vpop.f32.mrb[0].mxu0
      %v517 = vadd.f32 %v365, %v516
      %v518 = vpop.f32.mrb[0].mxu0
      %v519 = vpop.f32.mrb[0].mxu0
      %v520 = vadd.f32 %v365, %v519
      %v521 = vpop.f32.mrb[0].mxu0
      %522 = vmatprep.mubr.bf16.mxu0 0
      %523 = vmatmul.mubr.bf16.gmra.mrb[0].mxu0 %v442
      %v524 = vpop.f32.mrb[0].mxu0
      %v525 = vadd.f32 %v365, %v524
      %v526 = vpop.f32.mrb[0].mxu0
      %v527 = vpop.f32.mrb[0].mxu0
      %v528 = vadd.f32 %v365, %v527
      %v529 = vpop.f32.mrb[0].mxu0
      %530 = vmatprep.mubr.bf16.mxu0 0
      %531 = vmatmul.mubr.bf16.gmra.mrb[0].mxu0 %v445
      %v532 = vpop.f32.mrb[0].mxu0
      %v533 = vadd.f32 %v365, %v532
      %v534 = vpop.f32.mrb[0].mxu0
      %v535 = vpop.f32.mrb[0].mxu0
      %v536 = vadd.f32 %v365, %v535
      %v537 = vpop.f32.mrb[0].mxu0
      %538 = vmatprep.mubr.bf16.mxu0 0
      %539 = vmatmul.mubr.bf16.gmra.mrb[0].mxu0 %v448
      %v540 = vpop.f32.mrb[0].mxu0
      %v541 = vadd.f32 %v365, %v540
      %v542 = vpop.f32.mrb[0].mxu0
      %v543 = vpop.f32.mrb[0].mxu0
      %v544 = vadd.f32 %v365, %v543
      %v545 = vpop.f32.mrb[0].mxu0
      %546 = vdwg.mxu0
      %v547 = vmax.f32 %v485, 0.0
      %v548 = vmax.f32 %v488, 0.0
      %v549 = vmax.f32 %v493, 0.0
      %v550 = vmax.f32 %v496, 0.0
      %v551 = vmax.f32 %v501, 0.0
      %v552 = vmax.f32 %v504, 0.0
      %v553 = vmax.f32 %v509, 0.0
      %v554 = vmax.f32 %v512, 0.0
      %v555 = vmax.f32 %v517, 0.0
      %v556 = vmax.f32 %v520, 0.0
      %v557 = vmax.f32 %v525, 0.0
      %v558 = vmax.f32 %v528, 0.0
      %v559 = vmax.f32 %v533, 0.0
      %v560 = vmax.f32 %v536, 0.0
      %v561 = vmax.f32 %v541, 0.0
      %v562 = vmax.f32 %v544, 0.0
      %579 = vrot.lane.b32.xlu0 %v547, 96
      %v580 = vpop.permute.xlu0 %579
      %581 = vrot.lane.b32.xlu0 %v548, 96
      %v582 = vpop.permute.xlu0 %581
      %583 = vrot.lane.b32.xlu0 %v549, 96
      %v584 = vpop.permute.xlu0 %583
      %585 = vrot.lane.b32.xlu0 %v550, 96
      %v586 = vpop.permute.xlu0 %585
      %587 = vrot.lane.b32.xlu0 %v551, 96
      %v588 = vpop.permute.xlu0 %587
      %589 = vrot.lane.b32.xlu0 %v552, 96
      %v590 = vpop.permute.xlu0 %589
      %591 = vrot.lane.b32.xlu0 %v553, 96
      %v592 = vpop.permute.xlu0 %591
      %593 = vrot.lane.b32.xlu0 %v554, 96
      %v594 = vpop.permute.xlu0 %593
      %595 = vrot.lane.b32.xlu0 %v555, 96
      %v596 = vpop.permute.xlu0 %595
      %597 = vrot.lane.b32.xlu0 %v556, 96
      %v598 = vpop.permute.xlu0 %597
      %599 = vrot.lane.b32.xlu0 %v557, 96
      %v600 = vpop.permute.xlu0 %599
      %601 = vrot.lane.b32.xlu0 %v558, 96
      %v602 = vpop.permute.xlu0 %601
      %603 = vrot.lane.b32.xlu0 %v559, 96
      %v604 = vpop.permute.xlu0 %603
      %605 = vrot.lane.b32.xlu0 %v560, 96
      %v606 = vpop.permute.xlu0 %605
      %607 = vrot.lane.b32.xlu0 %v561, 96
      %v608 = vpop.permute.xlu0 %607
      %609 = vrot.lane.b32.xlu0 %v562, 96
      %v610 = vpop.permute.xlu0 %609
      %v627 = vadd.f32 %v547, %v580
      %v628 = vadd.f32 %v548, %v582
      %v629 = vadd.f32 %v549, %v584
      %v630 = vadd.f32 %v550, %v586
      %v631 = vadd.f32 %v551, %v588
      %v632 = vadd.f32 %v552, %v590
      %v633 = vadd.f32 %v553, %v592
      %v634 = vadd.f32 %v554, %v594
      %v635 = vadd.f32 %v555, %v596
      %v636 = vadd.f32 %v556, %v598
      %v637 = vadd.f32 %v557, %v600
      %v638 = vadd.f32 %v558, %v602
      %v639 = vadd.f32 %v559, %v604
      %v640 = vadd.f32 %v560, %v606
      %v641 = vadd.f32 %v561, %v608
      %v642 = vadd.f32 %v562, %v610
      %v643 = vmul.f32 %v627, 0.5
      %v644 = vmul.f32 %v628, 0.5
      %v645 = vmul.f32 %v629, 0.5
      %v646 = vmul.f32 %v630, 0.5
      %v647 = vmul.f32 %v631, 0.5
      %v648 = vmul.f32 %v632, 0.5
      %v649 = vmul.f32 %v633, 0.5
      %v650 = vmul.f32 %v634, 0.5
      %v651 = vmul.f32 %v635, 0.5
      %v652 = vmul.f32 %v636, 0.5
      %v653 = vmul.f32 %v637, 0.5
      %v654 = vmul.f32 %v638, 0.5
      %v655 = vmul.f32 %v639, 0.5
      %v656 = vmul.f32 %v640, 0.5
      %v657 = vmul.f32 %v641, 0.5
      %v658 = vmul.f32 %v642, 0.5
      %v659 = vpack.c.bf16 %v644, %v643
      %v660 = vpack.c.bf16 %v646, %v645
      %v661 = vpack.c.bf16 %v648, %v647
      %v662 = vpack.c.bf16 %v650, %v649
      %v663 = vpack.c.bf16 %v652, %v651
      %v664 = vpack.c.bf16 %v654, %v653
      %v665 = vpack.c.bf16 %v656, %v655
      %v666 = vpack.c.bf16 %v658, %v657
      %v667 = vld [vmem:[%s3] sm:$0xf]
      %v668 = vld [vmem:[%s3 + $0x4] sm:$0xf]
      %v669 = vld [vmem:[%s3 + $0x8] sm:$0xf]
      %v670 = vld [vmem:[%s3 + $0xc] sm:$0xf]
      %v671 = vld [vmem:[%s4] sm:$0x1]
      %v673 = vlaneseq
      %v674 = vshrl.u32 %v673, 7
      %v675 = vsub.s32 0, %v674
      %v676 = vrot.slane %v671, %v675
      %v682 = vunpack.c.l.b16 %v667
      %v683 = vunpack.c.l.b16 %v668
      %v684 = vunpack.c.l.b16 %v669
      %v685 = vunpack.c.l.b16 %v670
      %v686 = vpack.c.b16 %v683, %v682
      %v687 = vpack.c.b16 %v685, %v684
      %vm690 = vcmask 261120
      %v692 = vsel %vm690, %v659, 0
      %v695 = vsel %vm690, %v660, 0
      %v698 = vsel %vm690, %v661, 0
      %v701 = vsel %vm690, %v662, 0
      %v704 = vsel %vm690, %v663, 0
      %v707 = vsel %vm690, %v664, 0
      %v710 = vsel %vm690, %v665, 0
      %v713 = vsel %vm690, %v666, 0
      %715 = vmatprep.subr.bf16.mxu0 0
      %716 = vmatpush1.bf16.msra.mxu0 %v686
      %717 = vmatprep.subr.bf16.mxu0 0
      %718 = vmatpush1.bf16.msra.mxu0 %v687
      %719 = vmatprep.subr.bf16.mxu0 0
      %720 = vmatpush1.bf16.msra.mxu0 0
      %721 = vmatprep.subr.bf16.mxu0 0
      %722 = vmatpush1.bf16.msra.mxu0 0
      %723 = vmatprep.subr.bf16.mxu0 0
      %724 = vmatpush1.bf16.msra.mxu0 0
      %725 = vmatprep.subr.bf16.mxu0 0
      %726 = vmatpush1.bf16.msra.mxu0 0
      %727 = vmatprep.subr.bf16.mxu0 0
      %728 = vmatpush1.bf16.msra.mxu0 0
      %729 = vmatprep.subr.bf16.mxu0 0
      %730 = vmatpush1.bf16.msra.mxu0 0
      %731 = vmatprep.subr.bf16.mxu0 0
      %732 = vmatpush1.bf16.msra.mxu0 0
      %733 = vmatprep.subr.bf16.mxu0 0
      %734 = vmatpush1.bf16.msra.mxu0 0
      %735 = vmatprep.subr.bf16.mxu0 0
      %736 = vmatpush1.bf16.msra.mxu0 0
      %737 = vmatprep.subr.bf16.mxu0 0
      %738 = vmatpush1.bf16.msra.mxu0 0
      %739 = vmatprep.subr.bf16.mxu0 0
      %740 = vmatpush1.bf16.msra.mxu0 0
      %741 = vmatprep.subr.bf16.mxu0 0
      %742 = vmatpush1.bf16.msra.mxu0 0
      %743 = vmatprep.subr.bf16.mxu0 0
      %744 = vmatpush1.bf16.msra.mxu0 0
      %745 = vmatprep.subr.bf16.mxu0 0
      %746 = vmatpush1.bf16.msra.mxu0 0
      %747 = vmatprep.mubr.bf16.mxu0 0
      %748 = vmatmul.mubr.bf16.gmra.mrb[0].mxu0 %v692
      %v749 = vpop.f32.mrb[0].mxu0
      %v750 = vadd.f32 %v676, %v749
      %v751 = vpop.f32.mrb[0].mxu0
      %v752 = vpop.f32.mrb[0].mxu0
      %v753 = vadd.f32 %v676, %v752
      %v754 = vpop.f32.mrb[0].mxu0
      %755 = vmatprep.mubr.bf16.mxu0 0
      %756 = vmatmul.mubr.bf16.gmra.mrb[0].mxu0 %v695
      %v757 = vpop.f32.mrb[0].mxu0
      %v758 = vadd.f32 %v676, %v757
      %v759 = vpop.f32.mrb[0].mxu0
      %v760 = vpop.f32.mrb[0].mxu0
      %v761 = vadd.f32 %v676, %v760
      %v762 = vpop.f32.mrb[0].mxu0
      %763 = vmatprep.mubr.bf16.mxu0 0
      %764 = vmatmul.mubr.bf16.gmra.mrb[0].mxu0 %v698
      %v765 = vpop.f32.mrb[0].mxu0
      %v766 = vadd.f32 %v676, %v765
      %v767 = vpop.f32.mrb[0].mxu0
      %v768 = vpop.f32.mrb[0].mxu0
      %v769 = vadd.f32 %v676, %v768
      %v770 = vpop.f32.mrb[0].mxu0
      %771 = vmatprep.mubr.bf16.mxu0 0
      %772 = vmatmul.mubr.bf16.gmra.mrb[0].mxu0 %v701
      %v773 = vpop.f32.mrb[0].mxu0
      %v774 = vadd.f32 %v676, %v773
      %v775 = vpop.f32.mrb[0].mxu0
      %v776 = vpop.f32.mrb[0].mxu0
      %v777 = vadd.f32 %v676, %v776
      %v778 = vpop.f32.mrb[0].mxu0
      %779 = vmatprep.mubr.bf16.mxu0 0
      %780 = vmatmul.mubr.bf16.gmra.mrb[0].mxu0 %v704
      %v781 = vpop.f32.mrb[0].mxu0
      %v782 = vadd.f32 %v676, %v781
      %v783 = vpop.f32.mrb[0].mxu0
      %v784 = vpop.f32.mrb[0].mxu0
      %v785 = vadd.f32 %v676, %v784
      %v786 = vpop.f32.mrb[0].mxu0
      %787 = vmatprep.mubr.bf16.mxu0 0
      %788 = vmatmul.mubr.bf16.gmra.mrb[0].mxu0 %v707
      %v789 = vpop.f32.mrb[0].mxu0
      %v790 = vadd.f32 %v676, %v789
      %v791 = vpop.f32.mrb[0].mxu0
      %v792 = vpop.f32.mrb[0].mxu0
      %v793 = vadd.f32 %v676, %v792
      %v794 = vpop.f32.mrb[0].mxu0
      %795 = vmatprep.mubr.bf16.mxu0 0
      %796 = vmatmul.mubr.bf16.gmra.mrb[0].mxu0 %v710
      %v797 = vpop.f32.mrb[0].mxu0
      %v798 = vadd.f32 %v676, %v797
      %v799 = vpop.f32.mrb[0].mxu0
      %v800 = vpop.f32.mrb[0].mxu0
      %v801 = vadd.f32 %v676, %v800
      %v802 = vpop.f32.mrb[0].mxu0
      %803 = vmatprep.mubr.bf16.mxu0 0
      %804 = vmatmul.mubr.bf16.gmra.mrb[0].mxu0 %v713
      %v805 = vpop.f32.mrb[0].mxu0
      %v806 = vadd.f32 %v676, %v805
      %v807 = vpop.f32.mrb[0].mxu0
      %v808 = vpop.f32.mrb[0].mxu0
      %v809 = vadd.f32 %v676, %v808
      %v810 = vpop.f32.mrb[0].mxu0
      %811 = vdwg.mxu0
      %v812 = vmax.f32 %v750, 0.0
      %v813 = vmax.f32 %v753, 0.0
      %v814 = vmax.f32 %v758, 0.0
      %v815 = vmax.f32 %v761, 0.0
      %v816 = vmax.f32 %v766, 0.0
      %v817 = vmax.f32 %v769, 0.0
      %v818 = vmax.f32 %v774, 0.0
      %v819 = vmax.f32 %v777, 0.0
      %v820 = vmax.f32 %v782, 0.0
      %v821 = vmax.f32 %v785, 0.0
      %v822 = vmax.f32 %v790, 0.0
      %v823 = vmax.f32 %v793, 0.0
      %v824 = vmax.f32 %v798, 0.0
      %v825 = vmax.f32 %v801, 0.0
      %v826 = vmax.f32 %v806, 0.0
      %v827 = vmax.f32 %v809, 0.0
      %v828 = vpack.c.bf16 %v813, %v812
      %v829 = vpack.c.bf16 %v815, %v814
      %v830 = vpack.c.bf16 %v817, %v816
      %v831 = vpack.c.bf16 %v819, %v818
      %v832 = vpack.c.bf16 %v821, %v820
      %v833 = vpack.c.bf16 %v823, %v822
      %v834 = vpack.c.bf16 %v825, %v824
      %v835 = vpack.c.bf16 %v827, %v826
      %v836 = vld [vmem:[%s5] sm:$0xf]
      %v837 = vld [vmem:[%s5 + $0x4] sm:$0xf]
      %v838 = vld [vmem:[%s6] sm:$0x1]
      %v840 = vlaneseq
      %v841 = vshrl.u32 %v840, 7
      %v842 = vsub.s32 0, %v841
      %v843 = vrot.slane %v838, %v842
      %v847 = vunpack.c.l.b16 %v836
      %v848 = vunpack.c.l.b16 %v837
      %v849 = vpack.c.b16 %v848, %v847
      %vm851 = vcmask 130048
      %v853 = vsel %vm851, %v828, 0
      %v856 = vsel %vm851, %v829, 0
      %v859 = vsel %vm851, %v830, 0
      %v862 = vsel %vm851, %v831, 0
      %v865 = vsel %vm851, %v832, 0
      %v868 = vsel %vm851, %v833, 0
      %v871 = vsel %vm851, %v834, 0
      %v874 = vsel %vm851, %v835, 0
      %876 = vmatprep.subr.bf16.mxu0 0
      %877 = vmatpush1.bf16.msra.mxu0 %v849
      %878 = vmatprep.subr.bf16.mxu0 0
      %879 = vmatpush1.bf16.msra.mxu0 0
      %880 = vmatprep.subr.bf16.mxu0 0
      %881 = vmatpush1.bf16.msra.mxu0 0
      %882 = vmatprep.subr.bf16.mxu0 0
      %883 = vmatpush1.bf16.msra.mxu0 0
      %884 = vmatprep.subr.bf16.mxu0 0
      %885 = vmatpush1.bf16.msra.mxu0 0
      %886 = vmatprep.subr.bf16.mxu0 0
      %887 = vmatpush1.bf16.msra.mxu0 0
      %888 = vmatprep.subr.bf16.mxu0 0
      %889 = vmatpush1.bf16.msra.mxu0 0
      %890 = vmatprep.subr.bf16.mxu0 0
      %891 = vmatpush1.bf16.msra.mxu0 0
      %892 = vmatprep.subr.bf16.mxu0 0
      %893 = vmatpush1.bf16.msra.mxu0 0
      %894 = vmatprep.subr.bf16.mxu0 0
      %895 = vmatpush1.bf16.msra.mxu0 0
      %896 = vmatprep.subr.bf16.mxu0 0
      %897 = vmatpush1.bf16.msra.mxu0 0
      %898 = vmatprep.subr.bf16.mxu0 0
      %899 = vmatpush1.bf16.msra.mxu0 0
      %900 = vmatprep.subr.bf16.mxu0 0
      %901 = vmatpush1.bf16.msra.mxu0 0
      %902 = vmatprep.subr.bf16.mxu0 0
      %903 = vmatpush1.bf16.msra.mxu0 0
      %904 = vmatprep.subr.bf16.mxu0 0
      %905 = vmatpush1.bf16.msra.mxu0 0
      %906 = vmatprep.subr.bf16.mxu0 0
      %907 = vmatpush1.bf16.msra.mxu0 0
      %908 = vmatprep.mubr.bf16.mxu0 0
      %909 = vmatmul.mubr.bf16.gmra.mrb[0].mxu0 %v853
      %v910 = vpop.f32.mrb[0].mxu0
      %v911 = vadd.f32 %v843, %v910
      %v912 = vpop.f32.mrb[0].mxu0
      %v913 = vpop.f32.mrb[0].mxu0
      %v914 = vadd.f32 %v843, %v913
      %v915 = vpop.f32.mrb[0].mxu0
      %916 = vmatprep.mubr.bf16.mxu0 0
      %917 = vmatmul.mubr.bf16.gmra.mrb[0].mxu0 %v856
      %v918 = vpop.f32.mrb[0].mxu0
      %v919 = vadd.f32 %v843, %v918
      %v920 = vpop.f32.mrb[0].mxu0
      %v921 = vpop.f32.mrb[0].mxu0
      %v922 = vadd.f32 %v843, %v921
      %v923 = vpop.f32.mrb[0].mxu0
      %924 = vmatprep.mubr.bf16.mxu0 0
      %925 = vmatmul.mubr.bf16.gmra.mrb[0].mxu0 %v859
      %v926 = vpop.f32.mrb[0].mxu0
      %v927 = vadd.f32 %v843, %v926
      %v928 = vpop.f32.mrb[0].mxu0
      %v929 = vpop.f32.mrb[0].mxu0
      %v930 = vadd.f32 %v843, %v929
      %v931 = vpop.f32.mrb[0].mxu0
      %932 = vmatprep.mubr.bf16.mxu0 0
      %933 = vmatmul.mubr.bf16.gmra.mrb[0].mxu0 %v862
      %v934 = vpop.f32.mrb[0].mxu0
      %v935 = vadd.f32 %v843, %v934
      %v936 = vpop.f32.mrb[0].mxu0
      %v937 = vpop.f32.mrb[0].mxu0
      %v938 = vadd.f32 %v843, %v937
      %v939 = vpop.f32.mrb[0].mxu0
      %940 = vmatprep.mubr.bf16.mxu0 0
      %941 = vmatmul.mubr.bf16.gmra.mrb[0].mxu0 %v865
      %v942 = vpop.f32.mrb[0].mxu0
      %v943 = vadd.f32 %v843, %v942
      %v944 = vpop.f32.mrb[0].mxu0
      %v945 = vpop.f32.mrb[0].mxu0
      %v946 = vadd.f32 %v843, %v945
      %v947 = vpop.f32.mrb[0].mxu0
      %948 = vmatprep.mubr.bf16.mxu0 0
      %949 = vmatmul.mubr.bf16.gmra.mrb[0].mxu0 %v868
      %v950 = vpop.f32.mrb[0].mxu0
      %v951 = vadd.f32 %v843, %v950
      %v952 = vpop.f32.mrb[0].mxu0
      %v953 = vpop.f32.mrb[0].mxu0
      %v954 = vadd.f32 %v843, %v953
      %v955 = vpop.f32.mrb[0].mxu0
      %956 = vmatprep.mubr.bf16.mxu0 0
      %957 = vmatmul.mubr.bf16.gmra.mrb[0].mxu0 %v871
      %v958 = vpop.f32.mrb[0].mxu0
      %v959 = vadd.f32 %v843, %v958
      %v960 = vpop.f32.mrb[0].mxu0
      %v961 = vpop.f32.mrb[0].mxu0
      %v962 = vadd.f32 %v843, %v961
      %v963 = vpop.f32.mrb[0].mxu0
      %964 = vmatprep.mubr.bf16.mxu0 0
      %965 = vmatmul.mubr.bf16.gmra.mrb[0].mxu0 %v874
      %v966 = vpop.f32.mrb[0].mxu0
      %v967 = vadd.f32 %v843, %v966
      %v968 = vpop.f32.mrb[0].mxu0
      %v969 = vpop.f32.mrb[0].mxu0
      %v970 = vadd.f32 %v843, %v969
      %v971 = vpop.f32.mrb[0].mxu0
      %972 = vdwg.mxu0
      %v973 = vmax.f32 %v911, 0.0
      %v974 = vmax.f32 %v914, 0.0
      %v975 = vmax.f32 %v919, 0.0
      %v976 = vmax.f32 %v922, 0.0
      %v977 = vmax.f32 %v927, 0.0
      %v978 = vmax.f32 %v930, 0.0
      %v979 = vmax.f32 %v935, 0.0
      %v980 = vmax.f32 %v938, 0.0
      %v981 = vmax.f32 %v943, 0.0
      %v982 = vmax.f32 %v946, 0.0
      %v983 = vmax.f32 %v951, 0.0
      %v984 = vmax.f32 %v954, 0.0
      %v985 = vmax.f32 %v959, 0.0
      %v986 = vmax.f32 %v962, 0.0
      %v987 = vmax.f32 %v967, 0.0
      %v988 = vmax.f32 %v970, 0.0
      %v989 = vld [vmem:[%s7] sm:$0x1]
      %v991 = vlaneseq
      %v992 = vshrl.u32 %v991, 7
      %v993 = vsub.s32 0, %v992
      %v994 = vrot.slane %v989, %v993
      %v996 = vmul.f32 %v973, %v994
      %v997 = vmul.f32 %v974, %v994
      %v998 = vmul.f32 %v975, %v994
      %v999 = vmul.f32 %v976, %v994
      %v1000 = vmul.f32 %v977, %v994
      %v1001 = vmul.f32 %v978, %v994
      %v1002 = vmul.f32 %v979, %v994
      %v1003 = vmul.f32 %v980, %v994
      %v1004 = vmul.f32 %v981, %v994
      %v1005 = vmul.f32 %v982, %v994
      %v1006 = vmul.f32 %v983, %v994
      %v1007 = vmul.f32 %v984, %v994
      %v1008 = vmul.f32 %v985, %v994
      %v1009 = vmul.f32 %v986, %v994
      %v1010 = vmul.f32 %v987, %v994
      %v1011 = vmul.f32 %v988, %v994
      %vm1012 = vcmask 64512
      %v1013 = vsel %vm1012, %v996, 0.0
      %1014 = vadd.xlane.f32.xlu0 %v1013
      %v1015 = vpop.xlane.xlu0 %1014
      %v1016 = vsel %vm1012, %v997, 0.0
      %1017 = vadd.xlane.f32.xlu0 %v1016
      %v1018 = vpop.xlane.xlu0 %1017
      %v1019 = vsel %vm1012, %v998, 0.0
      %1020 = vadd.xlane.f32.xlu0 %v1019
      %v1021 = vpop.xlane.xlu0 %1020
      %v1022 = vsel %vm1012, %v999, 0.0
      %1023 = vadd.xlane.f32.xlu0 %v1022
      %v1024 = vpop.xlane.xlu0 %1023
      %v1025 = vsel %vm1012, %v1000, 0.0
      %1026 = vadd.xlane.f32.xlu0 %v1025
      %v1027 = vpop.xlane.xlu0 %1026
      %v1028 = vsel %vm1012, %v1001, 0.0
      %1029 = vadd.xlane.f32.xlu0 %v1028
      %v1030 = vpop.xlane.xlu0 %1029
      %v1031 = vsel %vm1012, %v1002, 0.0
      %1032 = vadd.xlane.f32.xlu0 %v1031
      %v1033 = vpop.xlane.xlu0 %1032
      %v1034 = vsel %vm1012, %v1003, 0.0
      %1035 = vadd.xlane.f32.xlu0 %v1034
      %v1036 = vpop.xlane.xlu0 %1035
      %v1037 = vsel %vm1012, %v1004, 0.0
      %1038 = vadd.xlane.f32.xlu0 %v1037
      %v1039 = vpop.xlane.xlu0 %1038
      %v1040 = vsel %vm1012, %v1005, 0.0
      %1041 = vadd.xlane.f32.xlu0 %v1040
      %v1042 = vpop.xlane.xlu0 %1041
      %v1043 = vsel %vm1012, %v1006, 0.0
      %1044 = vadd.xlane.f32.xlu0 %v1043
      %v1045 = vpop.xlane.xlu0 %1044
      %v1046 = vsel %vm1012, %v1007, 0.0
      %1047 = vadd.xlane.f32.xlu0 %v1046
      %v1048 = vpop.xlane.xlu0 %1047
      %v1049 = vsel %vm1012, %v1008, 0.0
      %1050 = vadd.xlane.f32.xlu0 %v1049
      %v1051 = vpop.xlane.xlu0 %1050
      %v1052 = vsel %vm1012, %v1009, 0.0
      %1053 = vadd.xlane.f32.xlu0 %v1052
      %v1054 = vpop.xlane.xlu0 %1053
      %v1055 = vsel %vm1012, %v1010, 0.0
      %1056 = vadd.xlane.f32.xlu0 %v1055
      %v1057 = vpop.xlane.xlu0 %1056
      %v1058 = vsel %vm1012, %v1011, 0.0
      %1059 = vadd.xlane.f32.xlu0 %v1058
      %v1060 = vpop.xlane.xlu0 %1059
      %s1061 = sld [smem:[#allocation2]]
      %v1062 = vstv %s1061
      %v1063 = vadd.f32 %v1015, %v1062
      %v1064 = vadd.f32 %v1018, %v1062
      %v1065 = vadd.f32 %v1021, %v1062
      %v1066 = vadd.f32 %v1024, %v1062
      %v1067 = vadd.f32 %v1027, %v1062
      %v1068 = vadd.f32 %v1030, %v1062
      %v1069 = vadd.f32 %v1033, %v1062
      %v1070 = vadd.f32 %v1036, %v1062
      %v1071 = vadd.f32 %v1039, %v1062
      %v1072 = vadd.f32 %v1042, %v1062
      %v1073 = vadd.f32 %v1045, %v1062
      %v1074 = vadd.f32 %v1048, %v1062
      %v1075 = vadd.f32 %v1051, %v1062
      %v1076 = vadd.f32 %v1054, %v1062
      %v1077 = vadd.f32 %v1057, %v1062
      %v1078 = vadd.f32 %v1060, %v1062
      %v1079 = vsub.f32 0.0, %v1063
      %v1080 = vsub.f32 0.0, %v1064
      %v1081 = vsub.f32 0.0, %v1065
      %v1082 = vsub.f32 0.0, %v1066
      %v1083 = vsub.f32 0.0, %v1067
      %v1084 = vsub.f32 0.0, %v1068
      %v1085 = vsub.f32 0.0, %v1069
      %v1086 = vsub.f32 0.0, %v1070
      %v1087 = vsub.f32 0.0, %v1071
      %v1088 = vsub.f32 0.0, %v1072
      %v1089 = vsub.f32 0.0, %v1073
      %v1090 = vsub.f32 0.0, %v1074
      %v1091 = vsub.f32 0.0, %v1075
      %v1092 = vsub.f32 0.0, %v1076
      %v1093 = vsub.f32 0.0, %v1077
      %v1094 = vsub.f32 0.0, %v1078
      %v1095 = vmul.f32 %v1079, 1.442695
      %v1096 = vpow.pop %v1095
      %v1097 = vmul.f32 %v1080, 1.442695
      %v1098 = vpow.pop %v1097
      %v1099 = vmul.f32 %v1081, 1.442695
      %v1100 = vpow.pop %v1099
      %v1101 = vmul.f32 %v1082, 1.442695
      %v1102 = vpow.pop %v1101
      %v1103 = vmul.f32 %v1083, 1.442695
      %v1104 = vpow.pop %v1103
      %v1105 = vmul.f32 %v1084, 1.442695
      %v1106 = vpow.pop %v1105
      %v1107 = vmul.f32 %v1085, 1.442695
      %v1108 = vpow.pop %v1107
      %v1109 = vmul.f32 %v1086, 1.442695
      %v1110 = vpow.pop %v1109
      %v1111 = vmul.f32 %v1087, 1.442695
      %v1112 = vpow.pop %v1111
      %v1113 = vmul.f32 %v1088, 1.442695
      %v1114 = vpow.pop %v1113
      %v1115 = vmul.f32 %v1089, 1.442695
      %v1116 = vpow.pop %v1115
      %v1117 = vmul.f32 %v1090, 1.442695
      %v1118 = vpow.pop %v1117
      %v1119 = vmul.f32 %v1091, 1.442695
      %v1120 = vpow.pop %v1119
      %v1121 = vmul.f32 %v1092, 1.442695
      %v1122 = vpow.pop %v1121
      %v1123 = vmul.f32 %v1093, 1.442695
      %v1124 = vpow.pop %v1123
      %v1125 = vmul.f32 %v1094, 1.442695
      %v1126 = vpow.pop %v1125
      %v1127 = vadd.f32 %v1096, 1.0
      %v1128 = vadd.f32 %v1098, 1.0
      %v1129 = vadd.f32 %v1100, 1.0
      %v1130 = vadd.f32 %v1102, 1.0
      %v1131 = vadd.f32 %v1104, 1.0
      %v1132 = vadd.f32 %v1106, 1.0
      %v1133 = vadd.f32 %v1108, 1.0
      %v1134 = vadd.f32 %v1110, 1.0
      %v1135 = vadd.f32 %v1112, 1.0
      %v1136 = vadd.f32 %v1114, 1.0
      %v1137 = vadd.f32 %v1116, 1.0
      %v1138 = vadd.f32 %v1118, 1.0
      %v1139 = vadd.f32 %v1120, 1.0
      %v1140 = vadd.f32 %v1122, 1.0
      %v1141 = vadd.f32 %v1124, 1.0
      %v1142 = vadd.f32 %v1126, 1.0
      %v1143 = vrcp.pop %v1127
      %v1144 = vmul.f32 1.0, %v1143
      %v1145 = vrcp.pop %v1128
      %v1146 = vmul.f32 1.0, %v1145
      %v1147 = vrcp.pop %v1129
      %v1148 = vmul.f32 1.0, %v1147
      %v1149 = vrcp.pop %v1130
      %v1150 = vmul.f32 1.0, %v1149
      %v1151 = vrcp.pop %v1131
      %v1152 = vmul.f32 1.0, %v1151
      %v1153 = vrcp.pop %v1132
      %v1154 = vmul.f32 1.0, %v1153
      %v1155 = vrcp.pop %v1133
      %v1156 = vmul.f32 1.0, %v1155
      %v1157 = vrcp.pop %v1134
      %v1158 = vmul.f32 1.0, %v1157
      %v1159 = vrcp.pop %v1135
      %v1160 = vmul.f32 1.0, %v1159
      %v1161 = vrcp.pop %v1136
      %v1162 = vmul.f32 1.0, %v1161
      %v1163 = vrcp.pop %v1137
      %v1164 = vmul.f32 1.0, %v1163
      %v1165 = vrcp.pop %v1138
      %v1166 = vmul.f32 1.0, %v1165
      %v1167 = vrcp.pop %v1139
      %v1168 = vmul.f32 1.0, %v1167
      %v1169 = vrcp.pop %v1140
      %v1170 = vmul.f32 1.0, %v1169
      %v1171 = vrcp.pop %v1141
      %v1172 = vmul.f32 1.0, %v1171
      %v1173 = vrcp.pop %v1142
      %v1174 = vmul.f32 1.0, %v1173
      %vm1175 = vcmask 7168
      %1176 = vst.msk [vmem:[%s335] sm:$0xff] %vm1175, %v1144
      %1177 = vst.msk [vmem:[%s335 + $0x8] sm:$0xff] %vm1175, %v1146
      %1178 = vst.msk [vmem:[%s335 + $0x10] sm:$0xff] %vm1175, %v1148
      %1179 = vst.msk [vmem:[%s335 + $0x18] sm:$0xff] %vm1175, %v1150
      %1180 = vst.msk [vmem:[%s335 + $0x20] sm:$0xff] %vm1175, %v1152
      %1181 = vst.msk [vmem:[%s335 + $0x28] sm:$0xff] %vm1175, %v1154
      %1182 = vst.msk [vmem:[%s335 + $0x30] sm:$0xff] %vm1175, %v1156
      %1183 = vst.msk [vmem:[%s335 + $0x38] sm:$0xff] %vm1175, %v1158
      %1184 = vst.msk [vmem:[%s335 + $0x40] sm:$0xff] %vm1175, %v1160
      %1185 = vst.msk [vmem:[%s335 + $0x48] sm:$0xff] %vm1175, %v1162
      %1186 = vst.msk [vmem:[%s335 + $0x50] sm:$0xff] %vm1175, %v1164
      %1187 = vst.msk [vmem:[%s335 + $0x58] sm:$0xff] %vm1175, %v1166
      %1188 = vst.msk [vmem:[%s335 + $0x60] sm:$0xff] %vm1175, %v1168
      %1189 = vst.msk [vmem:[%s335 + $0x68] sm:$0xff] %vm1175, %v1170
      %1190 = vst.msk [vmem:[%s335 + $0x70] sm:$0xff] %vm1175, %v1172
      %1191 = vst.msk [vmem:[%s335 + $0x78] sm:$0xff] %vm1175, %v1174
      %s1192 = smul.u32 16, %s21
      %p1193 = scmp.lt.s32.totalorder %s1192, 31
      %s1194 = scalar_select %p1193, %s1192, 31
      %s1195 = smul.addr %s1194, 8
      %s1196 = scalar_lea.vmem %s9, %s1195
      // Predicated region
      $region57: #{tpu_custom_call.1} parent=55 // pred_check
        %p1197 = pneg %p233
      $region58: #{tpu_custom_call.1} parent=55 // pred_check_branch
        %1199 = sbr.rel (%p1197) target = $region60
      $region59: #{tpu_custom_call.1} parent=55 // pred_region
        %s1200 = smul.u32 16, %s21
      $region60: #{tpu_custom_call.1} parent=55 // pred_fallthru
        _
    $region56: #{tpu_custom_call.1} parent=5 // pred_fallthru
      _
    %p1201 = scmp.le.s32.totalorder 2, %s16
    // Predicated region
    $region61: #{tpu_custom_call.1} parent=5 // pred_check
      %p1202 = pneg %p1201
    $region62: #{tpu_custom_call.1} parent=5 // pred_check_branch
      %1204 = sbr.rel (%p1202) target = $region64
    $region63: #{tpu_custom_call.1} parent=5 // pred_region
      %s1205 = ssub.s32 %s16, 2
      // Predicated region
      $region65: #{tpu_custom_call.1} parent=63 // pred_check
        %p1206 = pneg %p239
      $region66: #{tpu_custom_call.1} parent=63 // pred_check_branch
        %1208 = sbr.rel (%p1206) target = $region68
      $region67: #{tpu_custom_call.1} parent=63 // pred_region
        %s1209 = smul.u32 16, %s22
        %p1210 = scmp.lt.s32.totalorder %s1209, 31
        %s1211 = scalar_select %p1210, %s1209, 31
        %s1212 = smul.addr %s1211, 8
        %s1213 = scalar_lea.vmem %s9, %s1212
      $region68: #{tpu_custom_call.1} parent=63 // pred_fallthru
        _
    $region64: #{tpu_custom_call.1} parent=5 // pred_fallthru
      _
  $region6: #{tpu_custom_call.1} parent=0 // loop_footer
    %s20 = sadd.s32 1, %s16
  $region7: #{tpu_custom_call.1} parent=0 // loop_footer_branch
    %15 = sbr.rel target = $region3
  $region8: #{tpu_custom_call.1} parent=0 // loop_exit
    _

</llo_original>
